<compile_context>
chip_gen: v6e
topology: v6e:2x2x1
jax: 0.10.0
libtpu: 0.0.40
codegen_flags: <defaults>
</compile_context>

<pallas_src>
import functools
from typing import NamedTuple, Optional

import numpy as np
import jax
import jax.numpy as jnp
from jax.experimental import pallas as pl
from jax.experimental.pallas import tpu as pltpu

_MIB = 1024 * 1024


def _round_up(x, m):
    return ((x + m - 1) // m) * m


def _vmem_capacity_bytes():
    """Physical VMEM per core, with a conservative fallback if the query fails."""
    try:
        info = pltpu.get_tpu_info()
        for attr in ("vmem_capacity_bytes", "vmem_bytes", "vmem_size_bytes"):
            v = getattr(info, attr, None)
            if v:
                return int(v)
    except Exception:
        pass
    return 64 * _MIB  # v7x per-TC VMEM: safe lower bound across generations.


class SimpleClassifierParams(NamedTuple):
    """Padded + pre-cast parameters. Build once with prepare_params() and reuse."""
    w1: jax.Array   # [in_p, hid_p]   (pre-transposed vs torch's [out, in])
    b1: jax.Array   # [1, hid_p]      (f32)
    w2: jax.Array   # [hid_p, out_p]
    b2: jax.Array   # [1, out_p]      (f32)
    in_dim: int
    hid_dim: int
    out_dim: int


def prepare_params(w1, b1, w2, b2, *, param_dtype=jnp.bfloat16):
    """Pad feature dims to multiples of 128 (lane-dense) and cast ONCE.

    Weights are stored pre-transposed relative to torch.nn.Linear (which computes
    x @ W.T + b with W of shape [out, in]); here w1 is [in, hid] and w2 is [hid, out],
    so the kernel computes plain x @ W + b — identical math.
    Zero padding is mathematically inert (padded rows/cols contribute zero).
    """
    in_dim, hid_dim = w1.shape
    hid_dim2, out_dim = w2.shape
    assert hid_dim == hid_dim2, "w1/w2 hidden dims must match"
    pd = np.dtype(param_dtype)
    f32 = jnp.float32
    in_p, hid_p, out_p = (_round_up(d, 128) for d in (in_dim, hid_dim, out_dim))

    w1_p = jnp.zeros((in_p, hid_p), pd).at[:in_dim, :hid_dim].set(w1.astype(pd))
    w2_p = jnp.zeros((hid_p, out_p), pd).at[:hid_dim, :out_dim].set(w2.astype(pd))
    b1_p = jnp.zeros((1, hid_p), f32).at[0, :hid_dim].set(b1.astype(f32).reshape(-1))
    b2_p = jnp.zeros((1, out_p), f32).at[0, :out_dim].set(b2.astype(f32).reshape(-1))
    return SimpleClassifierParams(w1_p, b1_p, w2_p, b2_p, in_dim, hid_dim, out_dim)


def mlp_kernel(x_ref, w1_ref, b1_ref, w2_ref, b2_ref, o_ref, acc_ref):
    """One (batch tile, hidden tile) step: h = relu(x@W1_k + b1_k); acc += h@W2_k."""
    k = pl.program_id(1)

    @pl.when(k == 0)
    def _init():
        acc_ref[...] = jnp.zeros_like(acc_ref)

    x = x_ref[...]
    if x.dtype != w1_ref.dtype:
        # Pass-through (unpadded) x is cast per-tile on the VPU: avoids an extra
        # whole-array HBM convert pass in the wrapper.
        x = x.astype(w1_ref.dtype)
    # Layer 1 on the MXU with f32 accumulation; bias + ReLU epilogue in f32 (VPU).
    h = jnp.dot(x, w1_ref[...], preferred_element_type=jnp.float32)
    h = jnp.maximum(h + b1_ref[...], 0.0)
    # Dropout: inference-mode identity.
    # Layer 2: downcast activations only when params are sub-f32 (bf16 x bf16 MXU).
    if w2_ref.dtype != jnp.float32:
        h = h.astype(w2_ref.dtype)
    acc_ref[...] += jnp.dot(h, w2_ref[...], preferred_element_type=jnp.float32)

    @pl.when(k == pl.num_programs(1) - 1)
    def _finalize():
        o_ref[...] = (acc_ref[...] + b2_ref[...]).astype(o_ref.dtype)


@functools.partial(
    jax.jit,
    static_argnames=("in_dim", "out_dim", "block_b", "block_k", "out_dtype", "x_buffers"),
)
def _forward(x, w1_p, b1_p, w2_p, b2_p, *, in_dim, out_dim,
             block_b=None, block_k=None, out_dtype=None, x_buffers=2):
    B = x.shape[0]
    assert x.shape[1] == in_dim, f"x feature dim {x.shape[1]} != in_dim {in_dim}"
    in_p, hid_p = w1_p.shape
    _, out_p = w2_p.shape
    param_dtype = np.dtype(w1_p.dtype)
    param_item = param_dtype.itemsize
    out_dt = np.dtype(out_dtype) if out_dtype is not None else np.dtype(x.dtype)
    out_item = out_dt.itemsize
    x_item_est = max(np.dtype(x.dtype).itemsize, param_item)

    # ---------- generation-aware VMEM budget ----------
    vmem_cap = _vmem_capacity_bytes()
    budget = min(vmem_cap - 8 * _MIB, 100 * _MIB)   # ~56 MiB on v7x, ~100 MiB on v5e/v6e

    # ---------- batch tiling ----------
    b_pad0 = _round_up(B, 16)  # covers f32 (8,128) and bf16 (16,128) sublane tiling
    if block_b is None:
        # Small batch: a single full-batch tile (no extra grid-step overhead, no padding
        # waste).  Large batch: 512-row MXU-filling tiles that pipeline x/out DMAs.
        block_b = b_pad0 if b_pad0 <= 512 else 512
    block_b = min(_round_up(int(block_b), 16), _round_up(b_pad0, 16))

    def footprint(bb, bk):
        k_steps = hid_p // bk
        w_buf = 1 if k_steps == 1 else 2      # residents single-buffered, streamed double
        weights = w_buf * (in_p * bk + bk * out_p) * param_item
        biases = w_buf * bk * 4 + out_p * 4
        x_bytes = max(2, x_buffers) * bb * in_p * x_item_est
        out_bytes = 2 * bb * out_p * out_item
        acc_bytes = bb * out_p * 4
        hidden = bb * bk * 4                   # live f32 hidden tile
        return weights + biases + x_bytes + out_bytes + acc_bytes + hidden

    # ---------- hidden-dim tiling (K split only when residents don't fit) ----------
    if block_k is None:
        m = hid_p // 128
        cands = sorted({hid_p // d for d in range(1, m + 1) if m % d == 0}, reverse=True)
        block_k = cands[-1]                    # fallback: 128
        for cand in cands:
            if footprint(block_b, cand) <= budget:
                block_k = cand
                break
    else:
        block_k = int(block_k)
        if block_k % 128 != 0 or hid_p % block_k != 0:
            raise ValueError(f"block_k={block_k} must be a multiple of 128 dividing {hid_p}")

    # If still over budget at block_k=128, shrink the batch tile.
    while footprint(block_b, block_k) > budget and block_b > 16:
        block_b = max(16, _round_up(block_b // 2, 16))

    b_p = _round_up(b_pad0, block_b)
    grid_b = b_p // block_b
    grid_k = hid_p // block_k

    # ---------- wrapper-side copies only when needed ----------
    needs_x_copy = (b_p != B) or (in_p != in_dim)
    needs_out_slice = (b_p != B) or (out_p != out_dim)
    if needs_x_copy:
        # Single pass: pad and cast to the compute dtype together.
        x_in = jnp.zeros((b_p, in_p), param_dtype).at[:B, :in_dim].set(x.astype(param_dtype))
    else:
        x_in = x  # pass straight through; kernel casts per-tile if dtypes differ
    x_item = np.dtype(x_in.dtype).itemsize

    # ---------- cost estimate / VMEM limit (always set explicitly) ----------
    flops = 2 * b_p * in_p * hid_p + 2 * b_p * hid_p * out_p
    bytes_accessed = (
        b_p * in_p * x_item
        + (in_p * hid_p + hid_p * out_p) * param_item
        + (hid_p + out_p) * 4
        + b_p * out_p * out_item
    )
    cost = pl.CostEstimate(flops=int(flops), transcendentals=0,
                           bytes_accessed=int(bytes_accessed))
    fp = footprint(block_b, block_k)
    vmem_limit = int(min(budget, max(fp * 5 // 4 + 2 * _MIB, 16 * _MIB)))

    # Batch-axis parallelism (megacore sharding) only when total activation traffic
    # dominates the per-core duplicated weight DMA.
    act_total = b_p * (in_p * x_item + out_p * out_item)
    weight_total = (in_p * hid_p + hid_p * out_p) * param_item
    batch_parallel = (grid_b > 1) and (act_total >= 4 * weight_total)
    dim_sem = ("parallel" if batch_parallel else "arbitrary", "arbitrary")

    # ---------- BlockSpecs ----------
    if x_buffers == 2:
        x_spec = pl.BlockSpec((block_b, in_p), lambda i, k: (i, 0))
    else:
        x_spec = pl.BlockSpec((block_b, in_p), lambda i, k: (i, 0),
                              pipeline_mode=pl.Buffered(x_buffers))
    resident = pl.Buffered(1)
    if grid_k == 1:
        # Fully resident weights: constant index_map, single-buffered.
        w1_spec = pl.BlockSpec((in_p, block_k), lambda i, k: (0, 0), pipeline_mode=resident)
        b1_spec = pl.BlockSpec((1, block_k), lambda i, k: (0, 0), pipeline_mode=resident)
        w2_spec = pl.BlockSpec((block_k, out_p), lambda i, k: (0, 0), pipeline_mode=resident)
    else:
        # Hidden-dim split: stream weight slabs (double-buffered) along the k axis.
        w1_spec = pl.BlockSpec((in_p, block_k), lambda i, k: (0, k))
        b1_spec = pl.BlockSpec((1, block_k), lambda i, k: (0, k))
        w2_spec = pl.BlockSpec((block_k, out_p), lambda i, k: (k, 0))
    b2_spec = pl.BlockSpec((1, out_p), lambda i, k: (0, 0), pipeline_mode=resident)

    out_full = pl.pallas_call(
        mlp_kernel,
        out_shape=jax.ShapeDtypeStruct((b_p, out_p), out_dt),
        grid_spec=pltpu.PrefetchScalarGridSpec(
            num_scalar_prefetch=0,
            grid=(grid_b, grid_k),
            in_specs=[x_spec, w1_spec, b1_spec, w2_spec, b2_spec],
            out_specs=pl.BlockSpec((block_b, out_p), lambda i, k: (i, 0)),
            scratch_shapes=[pltpu.VMEM((block_b, out_p), jnp.float32)],
        ),
        compiler_params=pltpu.CompilerParams(
            dimension_semantics=dim_sem,
            vmem_limit_bytes=vmem_limit,
        ),
        cost_estimate=cost,
    )(x_in, w1_p, b1_p, w2_p, b2_p)

    if needs_out_slice:
        return out_full[:B, :out_dim]
    return out_full


def simple_classifier(x, params: SimpleClassifierParams, *,
                      block_b: Optional[int] = None, block_k: Optional[int] = None,
                      out_dtype=None, x_buffers: int = 2):
    """Forward pass. `params` should be built once with prepare_params() and reused."""
    return _forward(x, params.w1, params.b1, params.w2, params.b2,
                    in_dim=params.in_dim, out_dim=params.out_dim,
                    block_b=block_b, block_k=block_k,
                    out_dtype=out_dtype, x_buffers=x_buffers)


def reference(x, w1, b1, w2, b2):
    hp = jax.lax.Precision.HIGHEST
    h = jnp.maximum(jnp.dot(x, w1, precision=hp) + b1, 0.0)
    return jnp.dot(h, w2, precision=hp) + b2


if __name__ == "__main__":
    f32 = jnp.float32
    bf16 = jnp.bfloat16

    # ---- Test 1 & 2: small shapes consistent with the module's forward ----
    B, in_dim, hid_dim, out_dim = 48, 32, 64, 16
    key = jax.random.PRNGKey(0)
    kx, kw1, kb1, kw2, kb2, kx2, kw3, kw4 = jax.random.split(key, 8)

    x = jax.random.normal(kx, (B, in_dim), dtype=f32)
    lim1 = 1.0 / (in_dim ** 0.5)
    lim2 = 1.0 / (hid_dim ** 0.5)
    w1 = jax.random.uniform(kw1, (in_dim, hid_dim), f32, -lim1, lim1)
    b1 = jax.random.uniform(kb1, (hid_dim,), f32, -lim1, lim1)
    w2 = jax.random.uniform(kw2, (hid_dim, out_dim), f32, -lim2, lim2)
    b2 = jax.random.uniform(kb2, (out_dim,), f32, -lim2, lim2)

    # Default path: bf16-stored params (MXU-native), prepared ONCE and reused.
    params_bf16 = jax.tree_util.tree_map(
        lambda a: jax.block_until_ready(a) if isinstance(a, jax.Array) else a,
        prepare_params(w1, b1, w2, b2))
    out_bf16 = jax.block_until_ready(simple_classifier(x, params_bf16))
    out_bf16_again = jax.block_until_ready(simple_classifier(x, params_bf16))  # reuse
    ref_bf16 = reference(
        x.astype(bf16).astype(f32),
        w1.astype(bf16).astype(f32), b1,
        w2.astype(bf16).astype(f32), b2)
    assert out_bf16.shape == (B, out_dim)
    assert jnp.allclose(out_bf16, ref_bf16, atol=5e-2, rtol=5e-2), "bf16 mismatch vs reference"
    assert jnp.array_equal(out_bf16, out_bf16_again), "non-deterministic repeat call"

    # Exact f32 parameter path.
    params_f32 = prepare_params(w1, b1, w2, b2, param_dtype=f32)
    out_f32 = jax.block_until_ready(simple_classifier(x, params_f32))
    ref_f32 = reference(x, w1, b1, w2, b2)
    assert out_f32.shape == (B, out_dim)
    assert jnp.allclose(out_f32, ref_f32, atol=1e-5, rtol=1e-5), "f32 mismatch vs reference"

    # ---- Test 3: fully aligned shapes -> no x copy, no output slice, bf16 output ----
    B3, in3, hid3, out3 = 64, 128, 256, 128
    x3 = jax.random.normal(kx2, (B3, in3), dtype=f32)
    w13 = jax.random.uniform(kw3, (in3, hid3), f32, -1.0 / in3 ** 0.5, 1.0 / in3 ** 0.5)
    b13 = jnp.zeros((hid3,), f32)
    w23 = jax.random.uniform(kw4, (hid3, out3), f32, -1.0 / hid3 ** 0.5, 1.0 / hid3 ** 0.5)
    b23 = jnp.zeros((out3,), f32)
    params3 = prepare_params(w13, b13, w23, b23)  # bf16
    out3_arr = jax.block_until_ready(simple_classifier(x3, params3, out_dtype=bf16))
    ref3 = reference(x3.astype(bf16).astype(f32),
                     w13.astype(bf16).astype(f32), b13,
                     w23.astype(bf16).astype(f32), b23)
    assert out3_arr.shape == (B3, out3) and out3_arr.dtype == bf16
    assert jnp.allclose(out3_arr.astype(f32), ref3, atol=6e-2, rtol=6e-2), \
        "aligned bf16 mismatch vs reference"

    # ---- Test 4: forced hidden-dim split (exercises the K-grid accumulator path) ----
    hid4 = 300  # pads to 384; block_k=128 -> 3 k-steps
    kw5, kb5, kw6, kb6 = jax.random.split(jax.random.PRNGKey(1), 4)
    w14 = jax.random.uniform(kw5, (in_dim, hid4), f32, -lim1, lim1)
    b14 = jax.random.uniform(kb5, (hid4,), f32, -lim1, lim1)
    w24 = jax.random.uniform(kw6, (hid4, out_dim), f32,
                             -1.0 / hid4 ** 0.5, 1.0 / hid4 ** 0.5)
    b24 = jax.random.uniform(kb6, (out_dim,), f32, -1.0 / hid4 ** 0.5, 1.0 / hid4 ** 0.5)
    params4 = prepare_params(w14, b14, w24, b24, param_dtype=f32)
    out4 = jax.block_until_ready(simple_classifier(x, params4, block_k=128))
    ref4 = reference(x, w14, b14, w24, b24)
    assert out4.shape == (B, out_dim)
    assert jnp.allclose(out4, ref4, atol=1e-4, rtol=1e-4), "hid-split mismatch vs reference"

    print("KERNEL_OK")
</pallas_src>

<mosaic_0001>
module attributes {stable_mosaic.version = 11 : i64} {
  func.func @mlp_kernel(%arg0: i32, %arg1: i32, %arg2: memref<48x128xbf16, #tpu.memory_space<vmem>>, %arg3: memref<128x128xbf16, #tpu.memory_space<vmem>>, %arg4: memref<1x128xf32, #tpu.memory_space<vmem>>, %arg5: memref<128x128xbf16, #tpu.memory_space<vmem>>, %arg6: memref<1x128xf32, #tpu.memory_space<vmem>>, %arg7: memref<48x128xf32, #tpu.memory_space<vmem>>, %arg8: memref<48x128xf32, #tpu.memory_space<vmem>>) attributes {dimension_semantics = [#tpu.dimension_semantics<arbitrary>, #tpu.dimension_semantics<arbitrary>], iteration_bounds = array<i64: 1, 1>, scalar_prefetch = 0 : i64, scratch_operands = 1 : i64, tpu.core_type = #tpu.core_type<tc>, window_params = [{transform_indices = @transform_0, window_bounds = array<i64: 48, 128>}, {pipeline_mode = #tpu.pipeline_mode<synchronous>, transform_indices = @transform_1, window_bounds = array<i64: 128, 128>}, {pipeline_mode = #tpu.pipeline_mode<synchronous>, transform_indices = @transform_2, window_bounds = array<i64: 1, 128>}, {pipeline_mode = #tpu.pipeline_mode<synchronous>, transform_indices = @transform_3, window_bounds = array<i64: 128, 128>}, {pipeline_mode = #tpu.pipeline_mode<synchronous>, transform_indices = @transform_4, window_bounds = array<i64: 1, 128>}, {transform_indices = @transform_5, window_bounds = array<i64: 48, 128>}]} {
    %c0_i32 = arith.constant 0 : i32
    %0 = arith.cmpi eq, %arg1, %c0_i32 : i32
    %1 = arith.extui %0 : i1 to i32
    %c0_i32_0 = arith.constant 0 : i32
    %2 = arith.cmpi ne, %1, %c0_i32_0 : i32
    scf.if %2 {
      %cst_16 = arith.constant 0.000000e+00 : f32
      %20 = vector.broadcast %cst_16 : f32 to vector<48x128xf32>
      %c0_17 = arith.constant 0 : index
      %c0_18 = arith.constant 0 : index
      %21 = vector.load %arg8[%c0_17, %c0_18] : memref<48x128xf32, #tpu.memory_space<vmem>>, vector<48x128xf32>
      tpu.vector_store %arg8[%c0_17, %c0_18], %20 {strides = array<i32>} : memref<48x128xf32, #tpu.memory_space<vmem>>, vector<48x128xf32>,
    } else {
    }
    %c0 = arith.constant 0 : index
    %c0_1 = arith.constant 0 : index
    %3 = vector.load %arg2[%c0, %c0_1] : memref<48x128xbf16, #tpu.memory_space<vmem>>, vector<48x128xbf16>
    %c0_2 = arith.constant 0 : index
    %c0_3 = arith.constant 0 : index
    %4 = vector.load %arg3[%c0_2, %c0_3] : memref<128x128xbf16, #tpu.memory_space<vmem>>, vector<128x128xbf16>
    %cst = arith.constant dense<0.000000e+00> : vector<48x128xf32>
    %5 = tpu.matmul %3, %4, %cst {dimension_numbers = #tpu.dot_dimension_numbers<[1], [0], [0], [1], [0, 0, 1, 1], [], []>} : vector<48x128xbf16>, vector<128x128xbf16>, vector<48x128xf32> -> vector<48x128xf32>
    %c0_4 = arith.constant 0 : index
    %c0_5 = arith.constant 0 : index
    %6 = vector.load %arg4[%c0_4, %c0_5] : memref<1x128xf32, #tpu.memory_space<vmem>>, vector<1x128xf32>
    %7 = vector.broadcast %6 : vector<1x128xf32> to vector<48x128xf32>
    %8 = arith.addf %5, %7 : vector<48x128xf32>
    %cst_6 = arith.constant 0.000000e+00 : f32
    %9 = vector.broadcast %cst_6 : f32 to vector<48x128xf32>
    %10 = arith.maximumf %8, %9 : vector<48x128xf32>
    %11 = arith.truncf %10 : vector<48x128xf32> to vector<48x128xbf16>
    %c0_7 = arith.constant 0 : index
    %c0_8 = arith.constant 0 : index
    %12 = vector.load %arg8[%c0_7, %c0_8] : memref<48x128xf32, #tpu.memory_space<vmem>>, vector<48x128xf32>
    %c0_9 = arith.constant 0 : index
    %c0_10 = arith.constant 0 : index
    %13 = vector.load %arg5[%c0_9, %c0_10] : memref<128x128xbf16, #tpu.memory_space<vmem>>, vector<128x128xbf16>
    %cst_11 = arith.constant dense<0.000000e+00> : vector<48x128xf32>
    %14 = tpu.matmul %11, %13, %cst_11 {dimension_numbers = #tpu.dot_dimension_numbers<[1], [0], [0], [1], [0, 0, 1, 1], [], []>} : vector<48x128xbf16>, vector<128x128xbf16>, vector<48x128xf32> -> vector<48x128xf32>
    %15 = arith.addf %12, %14 : vector<48x128xf32>
    %c0_12 = arith.constant 0 : index
    %c0_13 = arith.constant 0 : index
    %16 = vector.load %arg8[%c0_12, %c0_13] : memref<48x128xf32, #tpu.memory_space<vmem>>, vector<48x128xf32>
    tpu.vector_store %arg8[%c0_12, %c0_13], %15 {strides = array<i32>} : memref<48x128xf32, #tpu.memory_space<vmem>>, vector<48x128xf32>,
    %c0_i32_14 = arith.constant 0 : i32
    %17 = arith.cmpi eq, %arg1, %c0_i32_14 : i32
    %18 = arith.extui %17 : i1 to i32
    %c0_i32_15 = arith.constant 0 : i32
    %19 = arith.cmpi ne, %18, %c0_i32_15 : i32
    scf.if %19 {
      %c0_16 = arith.constant 0 : index
      %c0_17 = arith.constant 0 : index
      %20 = vector.load %arg8[%c0_16, %c0_17] : memref<48x128xf32, #tpu.memory_space<vmem>>, vector<48x128xf32>
      %c0_18 = arith.constant 0 : index
      %c0_19 = arith.constant 0 : index
      %21 = vector.load %arg6[%c0_18, %c0_19] : memref<1x128xf32, #tpu.memory_space<vmem>>, vector<1x128xf32>
      %22 = vector.broadcast %21 : vector<1x128xf32> to vector<48x128xf32>
      %23 = arith.addf %20, %22 : vector<48x128xf32>
      %c0_20 = arith.constant 0 : index
      %c0_21 = arith.constant 0 : index
      %24 = vector.load %arg7[%c0_20, %c0_21] : memref<48x128xf32, #tpu.memory_space<vmem>>, vector<48x128xf32>
      tpu.vector_store %arg7[%c0_20, %c0_21], %23 {strides = array<i32>} : memref<48x128xf32, #tpu.memory_space<vmem>>, vector<48x128xf32>,
    } else {
    }
    return
  }
  func.func @transform_0(%arg0: i32, %arg1: i32) -> (i32, i32) {
    %c0_i32 = arith.constant 0 : i32
    %c0_i32_0 = arith.constant 0 : i32
    return %arg0, %c0_i32 : i32, i32
  }
  func.func @transform_1(%arg0: i32, %arg1: i32) -> (i32, i32) {
    %c0_i32 = arith.constant 0 : i32
    %c0_i32_0 = arith.constant 0 : i32
    %c0_i32_1 = arith.constant 0 : i32
    return %c0_i32, %c0_i32_0 : i32, i32
  }
  func.func @transform_2(%arg0: i32, %arg1: i32) -> (i32, i32) {
    %c0_i32 = arith.constant 0 : i32
    %c0_i32_0 = arith.constant 0 : i32
    %c0_i32_1 = arith.constant 0 : i32
    return %c0_i32, %c0_i32_0 : i32, i32
  }
  func.func @transform_3(%arg0: i32, %arg1: i32) -> (i32, i32) {
    %c0_i32 = arith.constant 0 : i32
    %c0_i32_0 = arith.constant 0 : i32
    %c0_i32_1 = arith.constant 0 : i32
    return %c0_i32, %c0_i32_0 : i32, i32
  }
  func.func @transform_4(%arg0: i32, %arg1: i32) -> (i32, i32) {
    %c0_i32 = arith.constant 0 : i32
    %c0_i32_0 = arith.constant 0 : i32
    %c0_i32_1 = arith.constant 0 : i32
    return %c0_i32, %c0_i32_0 : i32, i32
  }
  func.func @transform_5(%arg0: i32, %arg1: i32) -> (i32, i32) {
    %c0_i32 = arith.constant 0 : i32
    %c0_i32_0 = arith.constant 0 : i32
    return %arg0, %c0_i32 : i32, i32
  }
}

</mosaic_0001>

<llo_original>
// kernel: _forward.1
$region0: #{_forward.1}
  #allocation0 [shape = 'u32[]', space=smem, size = 0x4, offset = 0x4, fixed_abs, tag = 'smem constant byte address 0x4 - core index']
  #allocation1 [shape = 'u32[144,128]{1,0:T(1,128)}', space=vmem, size = 0x12000, scoped, tag = 'internal scratch']
  #allocation2 [shape = 'f32[48,128]{1,0:T(8,128)}', space=vmem, size = 0x6000, scoped, tag = 'scratch operand']
  %s0 = inlined_call_operand.vmem [shape: bf16[48,128], index: 0, kind: input, shape index: {}]
  %s1 = inlined_call_operand.vmem [shape: bf16[128,128], index: 1, kind: input, shape index: {}]
  %s2 = inlined_call_operand.vmem [shape: f32[1,128], index: 2, kind: input, shape index: {}]
  %s3 = inlined_call_operand.vmem [shape: bf16[128,128], index: 3, kind: input, shape index: {}]
  %s4 = inlined_call_operand.vmem [shape: f32[1,128], index: 4, kind: input, shape index: {}]
  %s5 = inlined_call_operand.vmem [shape: f32[48,128], index: 5, kind: output, shape index: {}]
  %s6 = sld [smem:[#allocation0]]
  $region38: #{_forward.1} parent=0
    _
  %s8 = ssub.s32 1, %s6
  %s9 = scalar_select 0, %s8, %s6
  // Predicated region
  $region2: #{_forward.1} parent=0 // pred_check
    _
  $region3: #{_forward.1} parent=0 // pred_check_branch
    %11 = sbr.rel (0) target = $region5
  $region4: #{_forward.1} parent=0 // pred_region
    _
  $region5: #{_forward.1} parent=0 // pred_fallthru
    _
  // Predicated region
  $region6: #{_forward.1} parent=0 // pred_check
    _
  $region7: #{_forward.1} parent=0 // pred_check_branch
    %13 = sbr.rel (0) target = $region9
  $region8: #{_forward.1} parent=0 // pred_region
    _
  $region9: #{_forward.1} parent=0 // pred_fallthru
    _
  // Predicated region
  $region10: #{_forward.1} parent=0 // pred_check
    _
  $region11: #{_forward.1} parent=0 // pred_check_branch
    %15 = sbr.rel (0) target = $region13
  $region12: #{_forward.1} parent=0 // pred_region
    _
  $region13: #{_forward.1} parent=0 // pred_fallthru
    _
  // Predicated region
  $region14: #{_forward.1} parent=0 // pred_check
    _
  $region15: #{_forward.1} parent=0 // pred_check_branch
    %17 = sbr.rel (0) target = $region17
  $region16: #{_forward.1} parent=0 // pred_region
    _
  $region17: #{_forward.1} parent=0 // pred_fallthru
    _
  // Predicated region
  $region18: #{_forward.1} parent=0 // pred_check
    _
  $region19: #{_forward.1} parent=0 // pred_check_branch
    %19 = sbr.rel (0) target = $region21
  $region20: #{_forward.1} parent=0 // pred_region
    _
  $region21: #{_forward.1} parent=0 // pred_fallthru
    _
  %p21 = scmp.eq.s32.totalorder 0, 0
  // Predicated region
  $region22: #{_forward.1} parent=0 // pred_check
    %p22 = pneg %p21
  $region23: #{_forward.1} parent=0 // pred_check_branch
    %24 = sbr.rel (%p22) target = $region25
  $region24: #{_forward.1} parent=0 // pred_region
    %25 = vst [vmem:[#allocation2] sm:$0xff] 0.0
    %26 = vst [vmem:[#allocation2 + $0x8] sm:$0xff] 0.0
    %27 = vst [vmem:[#allocation2 + $0x10] sm:$0xff] 0.0
    %28 = vst [vmem:[#allocation2 + $0x18] sm:$0xff] 0.0
    %29 = vst [vmem:[#allocation2 + $0x20] sm:$0xff] 0.0
    %30 = vst [vmem:[#allocation2 + $0x28] sm:$0xff] 0.0
  $region25: #{_forward.1} parent=0 // pred_fallthru
    _
  %v31 = vld [vmem:[%s0] sm:$0xf]
  %v32 = vld [vmem:[%s0 + $0x4] sm:$0xf]
  %v33 = vld [vmem:[%s0 + $0x8] sm:$0xf]
  %v34 = vld [vmem:[%s0 + $0xc] sm:$0xf]
  %v35 = vld [vmem:[%s0 + $0x10] sm:$0xf]
  %v36 = vld [vmem:[%s0 + $0x14] sm:$0xf]
  %v37 = vld [vmem:[%s1] sm:$0xf]
  %v38 = vld [vmem:[%s1 + $0x4] sm:$0xf]
  %v39 = vld [vmem:[%s1 + $0x8] sm:$0xf]
  %v40 = vld [vmem:[%s1 + $0xc] sm:$0xf]
  %v41 = vld [vmem:[%s1 + $0x10] sm:$0xf]
  %v42 = vld [vmem:[%s1 + $0x14] sm:$0xf]
  %v43 = vld [vmem:[%s1 + $0x18] sm:$0xf]
  %v44 = vld [vmem:[%s1 + $0x1c] sm:$0xf]
  %v45 = vld [vmem:[%s1 + $0x20] sm:$0xf]
  %v46 = vld [vmem:[%s1 + $0x24] sm:$0xf]
  %v47 = vld [vmem:[%s1 + $0x28] sm:$0xf]
  %v48 = vld [vmem:[%s1 + $0x2c] sm:$0xf]
  %v49 = vld [vmem:[%s1 + $0x30] sm:$0xf]
  %v50 = vld [vmem:[%s1 + $0x34] sm:$0xf]
  %v51 = vld [vmem:[%s1 + $0x38] sm:$0xf]
  %v52 = vld [vmem:[%s1 + $0x3c] sm:$0xf]
  %v53 = vld [vmem:[%s2] sm:$0x1]
  %v55 = vlaneseq
  %v56 = vshrl.u32 %v55, 7
  %v57 = vsub.s32 0, %v56
  %v58 = vrot.slane %v53, %v57
  %v66 = vunpack.c.l.b16 %v31
  %v67 = vunpack.c.l.b16 %v32
  %v68 = vunpack.c.l.b16 %v33
  %v69 = vunpack.c.l.b16 %v34
  %v70 = vunpack.c.l.b16 %v35
  %v71 = vunpack.c.l.b16 %v36
  %v72 = vpack.c.b16 %v67, %v66
  %v73 = vpack.c.b16 %v69, %v68
  %v74 = vpack.c.b16 %v71, %v70
  %v94 = vunpack.c.l.b16 %v37
  %v95 = vunpack.c.l.b16 %v38
  %v96 = vunpack.c.l.b16 %v39
  %v97 = vunpack.c.l.b16 %v40
  %v98 = vunpack.c.l.b16 %v41
  %v99 = vunpack.c.l.b16 %v42
  %v100 = vunpack.c.l.b16 %v43
  %v101 = vunpack.c.l.b16 %v44
  %v102 = vunpack.c.l.b16 %v45
  %v103 = vunpack.c.l.b16 %v46
  %v104 = vunpack.c.l.b16 %v47
  %v105 = vunpack.c.l.b16 %v48
  %v106 = vunpack.c.l.b16 %v49
  %v107 = vunpack.c.l.b16 %v50
  %v108 = vunpack.c.l.b16 %v51
  %v109 = vunpack.c.l.b16 %v52
  %v110 = vpack.c.b16 %v95, %v94
  %v111 = vpack.c.b16 %v97, %v96
  %v112 = vpack.c.b16 %v99, %v98
  %v113 = vpack.c.b16 %v101, %v100
  %v114 = vpack.c.b16 %v103, %v102
  %v115 = vpack.c.b16 %v105, %v104
  %v116 = vpack.c.b16 %v107, %v106
  %v117 = vpack.c.b16 %v109, %v108
  %126 = vmatprep.subr.bf16.mxu0 0
  %127 = vmatpush1.bf16.msra.mxu0 %v117
  %128 = vmatprep.subr.bf16.mxu0 0
  %129 = vmatpush1.bf16.msra.mxu0 %v116
  %130 = vmatprep.subr.bf16.mxu0 0
  %131 = vmatpush1.bf16.msra.mxu0 %v115
  %132 = vmatprep.subr.bf16.mxu0 0
  %133 = vmatpush1.bf16.msra.mxu0 %v114
  %134 = vmatprep.subr.bf16.mxu0 0
  %135 = vmatpush1.bf16.msra.mxu0 %v113
  %136 = vmatprep.subr.bf16.mxu0 0
  %137 = vmatpush1.bf16.msra.mxu0 %v112
  %138 = vmatprep.subr.bf16.mxu0 0
  %139 = vmatpush1.bf16.msra.mxu0 %v111
  %140 = vmatprep.subr.bf16.mxu0 0
  %141 = vmatpush1.bf16.msra.mxu0 %v110
  %142 = vmatprep.subr.bf16.mxu0 0
  %143 = vmatpush2.bf16.msra.mxu0 0
  %144 = vmatprep.subr.bf16.mxu0 0
  %145 = vmatpush2.bf16.msra.mxu0 0
  %146 = vmatprep.subr.bf16.mxu0 0
  %147 = vmatpush2.bf16.msra.mxu0 0
  %148 = vmatprep.subr.bf16.mxu0 0
  %149 = vmatpush2.bf16.msra.mxu0 0
  %150 = vmatprep.subr.bf16.mxu0 0
  %151 = vmatpush2.bf16.msra.mxu0 0
  %152 = vmatprep.subr.bf16.mxu0 0
  %153 = vmatpush2.bf16.msra.mxu0 0
  %154 = vmatprep.subr.bf16.mxu0 0
  %155 = vmatpush2.bf16.msra.mxu0 0
  %156 = vmatprep.subr.bf16.mxu0 0
  %157 = vmatpush2.bf16.msra.mxu0 0
  %158 = vmatprep.mubr.bf16.mxu0 0
  %159 = vmatmul.mubr.bf16.gmra.mxu0 %v72
  %v160 = vpop.f32.mrf.mxu0
  %v161 = vadd.f32 %v58, %v160
  %v162 = vpop.f32.mrf.mxu0
  %v163 = vpop.f32.mrf.mxu0
  %v164 = vadd.f32 %v58, %v163
  %v165 = vpop.f32.mrf.mxu0
  %166 = vmatprep.mubr.bf16.mxu0 0
  %167 = vmatmul.mubr.bf16.gmra.mxu0 %v73
  %v168 = vpop.f32.mrf.mxu0
  %v169 = vadd.f32 %v58, %v168
  %v170 = vpop.f32.mrf.mxu0
  %v171 = vpop.f32.mrf.mxu0
  %v172 = vadd.f32 %v58, %v171
  %v173 = vpop.f32.mrf.mxu0
  %174 = vmatprep.mubr.bf16.mxu0 0
  %175 = vmatmul.mubr.bf16.gmra.mxu0 %v74
  %v176 = vpop.f32.mrf.mxu0
  %v177 = vadd.f32 %v58, %v176
  %v178 = vpop.f32.mrf.mxu0
  %v179 = vpop.f32.mrf.mxu0
  %v180 = vadd.f32 %v58, %v179
  %v181 = vpop.f32.mrf.mxu0
  %182 = vdwg.mxu0
  %v183 = vmax.f32 %v161, 0.0
  %v184 = vmax.f32 %v164, 0.0
  %v185 = vmax.f32 %v169, 0.0
  %v186 = vmax.f32 %v172, 0.0
  %v187 = vmax.f32 %v177, 0.0
  %v188 = vmax.f32 %v180, 0.0
  %v189 = vpack.c.bf16 %v184, %v183
  %v190 = vpack.c.bf16 %v186, %v185
  %v191 = vpack.c.bf16 %v188, %v187
  %v192 = vld [vmem:[#allocation2] sm:$0xff]
  %v193 = vld [vmem:[#allocation2 + $0x8] sm:$0xff]
  %v194 = vld [vmem:[#allocation2 + $0x10] sm:$0xff]
  %v195 = vld [vmem:[#allocation2 + $0x18] sm:$0xff]
  %v196 = vld [vmem:[#allocation2 + $0x20] sm:$0xff]
  %v197 = vld [vmem:[#allocation2 + $0x28] sm:$0xff]
  %v198 = vld [vmem:[%s3] sm:$0xf]
  %v199 = vld [vmem:[%s3 + $0x4] sm:$0xf]
  %v200 = vld [vmem:[%s3 + $0x8] sm:$0xf]
  %v201 = vld [vmem:[%s3 + $0xc] sm:$0xf]
  %v202 = vld [vmem:[%s3 + $0x10] sm:$0xf]
  %v203 = vld [vmem:[%s3 + $0x14] sm:$0xf]
  %v204 = vld [vmem:[%s3 + $0x18] sm:$0xf]
  %v205 = vld [vmem:[%s3 + $0x1c] sm:$0xf]
  %v206 = vld [vmem:[%s3 + $0x20] sm:$0xf]
  %v207 = vld [vmem:[%s3 + $0x24] sm:$0xf]
  %v208 = vld [vmem:[%s3 + $0x28] sm:$0xf]
  %v209 = vld [vmem:[%s3 + $0x2c] sm:$0xf]
  %v210 = vld [vmem:[%s3 + $0x30] sm:$0xf]
  %v211 = vld [vmem:[%s3 + $0x34] sm:$0xf]
  %v212 = vld [vmem:[%s3 + $0x38] sm:$0xf]
  %v213 = vld [vmem:[%s3 + $0x3c] sm:$0xf]
  %v230 = vunpack.c.l.b16 %v198
  %v231 = vunpack.c.l.b16 %v199
  %v232 = vunpack.c.l.b16 %v200
  %v233 = vunpack.c.l.b16 %v201
  %v234 = vunpack.c.l.b16 %v202
  %v235 = vunpack.c.l.b16 %v203
  %v236 = vunpack.c.l.b16 %v204
  %v237 = vunpack.c.l.b16 %v205
  %v238 = vunpack.c.l.b16 %v206
  %v239 = vunpack.c.l.b16 %v207
  %v240 = vunpack.c.l.b16 %v208
  %v241 = vunpack.c.l.b16 %v209
  %v242 = vunpack.c.l.b16 %v210
  %v243 = vunpack.c.l.b16 %v211
  %v244 = vunpack.c.l.b16 %v212
  %v245 = vunpack.c.l.b16 %v213
  %v246 = vpack.c.b16 %v231, %v230
  %v247 = vpack.c.b16 %v233, %v232
  %v248 = vpack.c.b16 %v235, %v234
  %v249 = vpack.c.b16 %v237, %v236
  %v250 = vpack.c.b16 %v239, %v238
  %v251 = vpack.c.b16 %v241, %v240
  %v252 = vpack.c.b16 %v243, %v242
  %v253 = vpack.c.b16 %v245, %v244
  %262 = vmatprep.subr.bf16.mxu0 0
  %263 = vmatpush1.bf16.msra.mxu0 %v253
  %264 = vmatprep.subr.bf16.mxu0 0
  %265 = vmatpush1.bf16.msra.mxu0 %v252
  %266 = vmatprep.subr.bf16.mxu0 0
  %267 = vmatpush1.bf16.msra.mxu0 %v251
  %268 = vmatprep.subr.bf16.mxu0 0
  %269 = vmatpush1.bf16.msra.mxu0 %v250
  %270 = vmatprep.subr.bf16.mxu0 0
  %271 = vmatpush1.bf16.msra.mxu0 %v249
  %272 = vmatprep.subr.bf16.mxu0 0
  %273 = vmatpush1.bf16.msra.mxu0 %v248
  %274 = vmatprep.subr.bf16.mxu0 0
  %275 = vmatpush1.bf16.msra.mxu0 %v247
  %276 = vmatprep.subr.bf16.mxu0 0
  %277 = vmatpush1.bf16.msra.mxu0 %v246
  %278 = vmatprep.subr.bf16.mxu0 0
  %279 = vmatpush2.bf16.msra.mxu0 0
  %280 = vmatprep.subr.bf16.mxu0 0
  %281 = vmatpush2.bf16.msra.mxu0 0
  %282 = vmatprep.subr.bf16.mxu0 0
  %283 = vmatpush2.bf16.msra.mxu0 0
  %284 = vmatprep.subr.bf16.mxu0 0
  %285 = vmatpush2.bf16.msra.mxu0 0
  %286 = vmatprep.subr.bf16.mxu0 0
  %287 = vmatpush2.bf16.msra.mxu0 0
  %288 = vmatprep.subr.bf16.mxu0 0
  %289 = vmatpush2.bf16.msra.mxu0 0
  %290 = vmatprep.subr.bf16.mxu0 0
  %291 = vmatpush2.bf16.msra.mxu0 0
  %292 = vmatprep.subr.bf16.mxu0 0
  %293 = vmatpush2.bf16.msra.mxu0 0
  %294 = vmatprep.mubr.bf16.mxu0 0
  %295 = vmatmul.mubr.bf16.gmra.mxu0 %v189
  %v296 = vpop.f32.mrf.mxu0
  %v297 = vadd.f32 0.0, %v296
  %v298 = vpop.f32.mrf.mxu0
  %v299 = vpop.f32.mrf.mxu0
  %v300 = vadd.f32 0.0, %v299
  %v301 = vpop.f32.mrf.mxu0
  %302 = vmatprep.mubr.bf16.mxu0 0
  %303 = vmatmul.mubr.bf16.gmra.mxu0 %v190
  %v304 = vpop.f32.mrf.mxu0
  %v305 = vadd.f32 0.0, %v304
  %v306 = vpop.f32.mrf.mxu0
  %v307 = vpop.f32.mrf.mxu0
  %v308 = vadd.f32 0.0, %v307
  %v309 = vpop.f32.mrf.mxu0
  %310 = vmatprep.mubr.bf16.mxu0 0
  %311 = vmatmul.mubr.bf16.gmra.mxu0 %v191
  %v312 = vpop.f32.mrf.mxu0
  %v313 = vadd.f32 0.0, %v312
  %v314 = vpop.f32.mrf.mxu0
  %v315 = vpop.f32.mrf.mxu0
  %v316 = vadd.f32 0.0, %v315
  %v317 = vpop.f32.mrf.mxu0
  %318 = vdwg.mxu0
  %v319 = vadd.f32 %v192, %v297
  %v320 = vadd.f32 %v193, %v300
  %v321 = vadd.f32 %v194, %v305
  %v322 = vadd.f32 %v195, %v308
  %v323 = vadd.f32 %v196, %v313
  %v324 = vadd.f32 %v197, %v316
  %325 = vst [vmem:[#allocation2] sm:$0xff] %v319
  %326 = vst [vmem:[#allocation2 + $0x8] sm:$0xff] %v320
  %327 = vst [vmem:[#allocation2 + $0x10] sm:$0xff] %v321
  %328 = vst [vmem:[#allocation2 + $0x18] sm:$0xff] %v322
  %329 = vst [vmem:[#allocation2 + $0x20] sm:$0xff] %v323
  %330 = vst [vmem:[#allocation2 + $0x28] sm:$0xff] %v324
  // Predicated region
  $region26: #{_forward.1} parent=0 // pred_check
    %p331 = pneg %p21
  $region27: #{_forward.1} parent=0 // pred_check_branch
    %333 = sbr.rel (%p331) target = $region29
  $region28: #{_forward.1} parent=0 // pred_region
    %v334 = vld [vmem:[#allocation2] sm:$0xff]
    %v335 = vld [vmem:[#allocation2 + $0x8] sm:$0xff]
    %v336 = vld [vmem:[#allocation2 + $0x10] sm:$0xff]
    %v337 = vld [vmem:[#allocation2 + $0x18] sm:$0xff]
    %v338 = vld [vmem:[#allocation2 + $0x20] sm:$0xff]
    %v339 = vld [vmem:[#allocation2 + $0x28] sm:$0xff]
    %v340 = vld [vmem:[%s4] sm:$0x1]
    %v342 = vlaneseq
    %v343 = vshrl.u32 %v342, 7
    %v344 = vsub.s32 0, %v343
    %v345 = vrot.slane %v340, %v344
    %v347 = vadd.f32 %v334, %v345
    %v348 = vadd.f32 %v335, %v345
    %v349 = vadd.f32 %v336, %v345
    %v350 = vadd.f32 %v337, %v345
    %v351 = vadd.f32 %v338, %v345
    %v352 = vadd.f32 %v339, %v345
    %353 = vst [vmem:[%s5] sm:$0xff] %v347
    %354 = vst [vmem:[%s5 + $0x8] sm:$0xff] %v348
    %355 = vst [vmem:[%s5 + $0x10] sm:$0xff] %v349
    %356 = vst [vmem:[%s5 + $0x18] sm:$0xff] %v350
    %357 = vst [vmem:[%s5 + $0x20] sm:$0xff] %v351
    %358 = vst [vmem:[%s5 + $0x28] sm:$0xff] %v352
  $region29: #{_forward.1} parent=0 // pred_fallthru
    _
  // Predicated region
  $region30: #{_forward.1} parent=0 // pred_check
    _
  $region31: #{_forward.1} parent=0 // pred_check_branch
    %360 = sbr.rel (0) target = $region33
  $region32: #{_forward.1} parent=0 // pred_region
    _
  $region33: #{_forward.1} parent=0 // pred_fallthru
    _
  // Predicated region
  $region34: #{_forward.1} parent=0 // pred_check
    _
  $region35: #{_forward.1} parent=0 // pred_check_branch
    %362 = sbr.rel (0) target = $region37
  $region36: #{_forward.1} parent=0 // pred_region
    _
  $region37: #{_forward.1} parent=0 // pred_fallthru
    _

</llo_original>
